<compile_context>
chip_gen: v6e
topology: v6e:2x2x1
jax: 0.10.0
libtpu: 0.0.40
codegen_flags: <defaults>
</compile_context>

<pallas_src>
import functools
import math

import jax
import jax.numpy as jnp
import numpy as np
from jax.experimental import pallas as pl
from jax.experimental.pallas import tpu as pltpu

_LANE = 128
_SUBLANE = 8
_PAD_UNIT = _LANE * _SUBLANE          # 1024: keeps rows a multiple of 8
_VMEM_LIMIT = 32 * 1024 * 1024        # explicit scoped-VMEM limit (safe on all gens)
_MAX_BLOCK_BYTES = 4 << 20            # ~4 MiB per f32 block


def _round_up(x, m):
    return (x + m - 1) // m * m


def _pick_row_tile(rows, bytes_per_row, max_block_bytes=_MAX_BLOCK_BYTES):
    """Largest multiple of 8 that divides `rows`, keeps a single block under
    max_block_bytes, and (when rows allow) leaves >= 2 tiles on the parallel
    row axis so both v7x TensorCores get work."""
    assert rows % _SUBLANE == 0
    cap = max(_SUBLANE, (max_block_bytes // max(bytes_per_row, 1))
              // _SUBLANE * _SUBLANE)
    if rows >= 2 * _SUBLANE:
        cap = min(cap, (rows // 2) // _SUBLANE * _SUBLANE)
    cap = min(cap, rows)
    for cand in range(cap, _SUBLANE - 1, -_SUBLANE):
        if rows % cand == 0:
            return cand
    return _SUBLANE


# ------------------------------ single step ----------------------------------

def _step_kernel(x_ref, y_pre_ref, y_ref, *, alpha, beta):
    # Pure VPU elementwise op on a lane-dense (tile, 128) block.
    y_ref[...] = alpha * y_pre_ref[...] + beta * x_ref[...].astype(jnp.float32)


def _step_call(x_pad, y_pre_pad, *, alpha, beta):
    rows, cols = y_pre_pad.shape
    tile = _pick_row_tile(rows, cols * 4)
    kernel = functools.partial(_step_kernel, alpha=alpha, beta=beta)
    return pl.pallas_call(
        kernel,
        out_shape=jax.ShapeDtypeStruct((rows, cols), jnp.float32),
        grid=(rows // tile,),
        in_specs=[
            pl.BlockSpec((tile, cols), lambda r: (r, 0)),
            pl.BlockSpec((tile, cols), lambda r: (r, 0)),
        ],
        out_specs=pl.BlockSpec((tile, cols), lambda r: (r, 0)),
        input_output_aliases={1: 0},          # y_pre buffer reused for y
        compiler_params=pltpu.CompilerParams(
            dimension_semantics=("parallel",),
            vmem_limit_bytes=_VMEM_LIMIT),
    )(x_pad, y_pre_pad)


# --------------------------- fused T-step rollout -----------------------------

def _rollout_kernel(y0_ref, x_ref, y_ref, state_ref, *, alpha, beta, tt):
    @pl.when(pl.program_id(1) == 0)
    def _():                                  # load carried state once per row tile
        state_ref[...] = y0_ref[...]

    carry = state_ref[...]                    # (tile, 128) f32, lives in regs/VMEM
    for i in range(tt):                       # static unroll over the TT chunk
        carry = alpha * carry + beta * x_ref[i].astype(jnp.float32)
        y_ref[i] = carry                      # one full-lane store per step
    state_ref[...] = carry                    # single state writeback per chunk


def _rollout_call(xs_k, y0_pad, *, alpha, beta, tt):
    Tp, rows, cols = xs_k.shape
    assert Tp % tt == 0
    tile = _pick_row_tile(rows, tt * cols * 4)
    grid = (rows // tile, Tp // tt)           # recurrent (time) axis last
    kernel = functools.partial(_rollout_kernel, alpha=alpha, beta=beta, tt=tt)
    return pl.pallas_call(
        kernel,
        out_shape=jax.ShapeDtypeStruct((Tp, rows, cols), jnp.float32),
        grid=grid,
        in_specs=[
            pl.BlockSpec((tile, cols), lambda r, t: (r, 0)),         # y0
            pl.BlockSpec((tt, tile, cols), lambda r, t: (t, r, 0)),  # x chunk
        ],
        out_specs=pl.BlockSpec((tt, tile, cols), lambda r, t: (t, r, 0)),
        scratch_shapes=[pltpu.VMEM((tile, cols), jnp.float32)],
        compiler_params=pltpu.CompilerParams(
            dimension_semantics=("parallel", "arbitrary"),
            vmem_limit_bytes=_VMEM_LIMIT),
    )(y0_pad, xs_k)


# --------------------------------- wrapper ------------------------------------

class MotorDelay130:
    """JAX/Pallas port of MotorDelay_130.

    forward(x):  one IIR step (matches the PyTorch forward). State is kept on
                 device in a padded lane-dense (rows, 128) layout.
    rollout(xs): fused T-step version, xs: (T, num_envs, num_actions); one
                 pallas_call with TT timesteps batched per grid step.
    """

    def __init__(self, num_envs, num_actions, donate_state=False, tt=8):
        self.a = 0.91
        self.b = 11.28
        self.alpha = float(math.exp(-1.0 / self.b))
        self.beta = float(self.a / self.b)
        self.num_envs = num_envs
        self.num_actions = num_actions
        self.donate_state = donate_state
        self.tt = max(1, int(tt))

        self.n = num_envs * num_actions
        self.n_pad = _round_up(self.n, _PAD_UNIT)
        self.rows = self.n_pad // _LANE
        self._y_pad = jnp.zeros((self.rows, _LANE), jnp.float32)

        alpha, beta = self.alpha, self.beta
        E, A, n, n_pad, rows = num_envs, num_actions, self.n, self.n_pad, self.rows
        tt_max = self.tt

        def to_pad(x2d):                      # (E, A) -> (rows, 128), zero padded
            flat = x2d.reshape(n)
            flat = jnp.pad(flat, (0, n_pad - n))
            return flat.reshape(rows, _LANE)

        def from_pad(y_pad):                  # (rows, 128) -> (E, A)
            return y_pad.reshape(n_pad)[:n].reshape(E, A)

        def step_fn(x, y_pad):
            if x.ndim == 1:
                x = x[:, None]                # torch unsqueeze(1)
            x = jnp.broadcast_to(x, (E, A)).astype(jnp.float32)
            y_pad_new = _step_call(to_pad(x), y_pad, alpha=alpha, beta=beta)
            return from_pad(y_pad_new), y_pad_new

        def rollout_fn(xs, y_pad):
            T = xs.shape[0]
            tt = min(tt_max, T)
            Tp = _round_up(T, tt)             # pad time axis; extra steps discarded
            xs_flat = xs.reshape(T, n).astype(jnp.float32)
            xs_flat = jnp.pad(xs_flat, ((0, Tp - T), (0, n_pad - n)))
            xs_k = xs_flat.reshape(Tp, rows, _LANE)
            ys_pad = _rollout_call(xs_k, y_pad, alpha=alpha, beta=beta, tt=tt)
            ys = ys_pad[:T].reshape(T, n_pad)[:, :n].reshape(T, E, A)
            return ys, ys_pad[T - 1]

        self._step_donate = jax.jit(step_fn, donate_argnums=(1,))
        self._step_plain = jax.jit(step_fn)
        self._rollout = jax.jit(rollout_fn)

    @property
    def y_pre(self):
        return (self._y_pad.reshape(self.n_pad)[:self.n]
                .reshape(self.num_envs, self.num_actions))

    def forward(self, x):
        step = self._step_donate if self.donate_state else self._step_plain
        y, y_pad = step(x, self._y_pad)
        self._y_pad = y_pad
        return y

    __call__ = forward

    def rollout(self, xs):
        ys, y_pad = self._rollout(xs, self._y_pad)
        self._y_pad = y_pad
        return ys

    def reset(self, env_idx):
        env_idx = jnp.atleast_1d(jnp.asarray(env_idx))
        flat_idx = (env_idx[:, None] * self.num_actions
                    + jnp.arange(self.num_actions)[None, :]).reshape(-1)
        flat = self._y_pad.reshape(self.n_pad).at[flat_idx].set(0.0)
        self._y_pad = flat.reshape(self.rows, _LANE)


if __name__ == "__main__":
    key = jax.random.PRNGKey(0)
    k1, k2, k3, k4, k5, k6 = jax.random.split(key, 6)

    # --- single-step path (matches the PyTorch forward API) -------------------
    num_envs, num_actions = 16, 12
    delay = MotorDelay130(num_envs, num_actions)
    alpha, beta = delay.alpha, delay.beta

    x1 = jax.random.normal(k1, (num_envs, num_actions), dtype=jnp.float32)
    y1_h = np.asarray(jax.block_until_ready(delay.forward(x1)))

    x2 = jax.random.normal(k2, (num_envs, num_actions), dtype=jnp.float32)
    y2_h = np.asarray(jax.block_until_ready(delay.forward(x2)))

    x1d = jax.random.normal(k3, (num_envs,), dtype=jnp.float32)   # 1-D broadcast
    y3_h = np.asarray(jax.block_until_ready(delay.forward(x1d)))

    x1_h, x2_h, x1d_h = np.asarray(x1), np.asarray(x2), np.asarray(x1d)
    ref1 = beta * x1_h
    ref2 = alpha * ref1 + beta * x2_h
    ref3 = alpha * ref2 + beta * x1d_h[:, None]
    assert np.allclose(y1_h, ref1, atol=1e-6, rtol=1e-6)
    assert np.allclose(y2_h, ref2, atol=1e-6, rtol=1e-6)
    assert np.allclose(y3_h, ref3, atol=1e-6, rtol=1e-6)

    # --- fused multi-step rollout, natural (16,12) shape -----------------------
    T = 8
    delay_r = MotorDelay130(num_envs, num_actions)
    xs = jax.random.normal(k4, (T, num_envs, num_actions), dtype=jnp.float32)
    ys_h = np.asarray(jax.block_until_ready(delay_r.rollout(xs)))
    xs_h = np.asarray(xs)
    state = np.zeros((num_envs, num_actions), np.float32)
    refs = []
    for t in range(T):
        state = alpha * state + beta * xs_h[t]
        refs.append(state)
    refs = np.stack(refs)
    assert np.allclose(ys_h, refs, atol=1e-5, rtol=1e-5)
    assert np.allclose(np.asarray(delay_r.y_pre), refs[-1], atol=1e-5, rtol=1e-5)

    # --- fused rollout, already lane-dense (64*16 = 1024) ----------------------
    T2, E2, A2 = 6, 64, 16
    delay_d = MotorDelay130(E2, A2)
    xs2 = jax.random.normal(k5, (T2, E2, A2), dtype=jnp.float32)
    ys2_h = np.asarray(jax.block_until_ready(delay_d.rollout(xs2)))
    xs2_h = np.asarray(xs2)
    state = np.zeros((E2, A2), np.float32)
    refs2 = []
    for t in range(T2):
        state = alpha * state + beta * xs2_h[t]
        refs2.append(state)
    refs2 = np.stack(refs2)
    assert np.allclose(ys2_h, refs2, atol=1e-5, rtol=1e-5)

    # --- rollout with T not a multiple of TT (exercises time-axis padding) -----
    T3 = 10
    delay_p = MotorDelay130(num_envs, num_actions, tt=8)
    xs3 = jax.random.normal(k6, (T3, num_envs, num_actions), dtype=jnp.float32)
    ys3_h = np.asarray(jax.block_until_ready(delay_p.rollout(xs3)))
    xs3_h = np.asarray(xs3)
    state = np.zeros((num_envs, num_actions), np.float32)
    refs3 = []
    for t in range(T3):
        state = alpha * state + beta * xs3_h[t]
        refs3.append(state)
    refs3 = np.stack(refs3)
    assert np.allclose(ys3_h, refs3, atol=1e-5, rtol=1e-5)
    assert np.allclose(np.asarray(delay_p.y_pre), refs3[-1], atol=1e-5, rtol=1e-5)

    # --- reset() semantics ------------------------------------------------------
    delay_r.reset(jnp.array([0, 3]))
    y_pre_h = np.asarray(jax.block_until_ready(delay_r.y_pre))
    assert np.allclose(y_pre_h[np.array([0, 3])], 0.0)
    assert np.allclose(y_pre_h[1], refs[-1][1], atol=1e-5, rtol=1e-5)

    print("KERNEL_OK")
</pallas_src>

<mosaic_0001>
module attributes {stable_mosaic.version = 11 : i64} {
  func.func @_step_kernel(%arg0: i32, %arg1: memref<8x128xf32, #tpu.memory_space<vmem>>, %arg2: memref<8x128xf32, #tpu.memory_space<vmem>>, %arg3: memref<8x128xf32, #tpu.memory_space<vmem>>) attributes {dimension_semantics = [#tpu.dimension_semantics<parallel>], iteration_bounds = array<i64: 1>, scalar_prefetch = 0 : i64, scratch_operands = 0 : i64, tpu.core_type = #tpu.core_type<tc>, window_params = [{transform_indices = @transform_0, window_bounds = array<i64: 8, 128>}, {transform_indices = @transform_1, window_bounds = array<i64: 8, 128>}, {transform_indices = @transform_2, window_bounds = array<i64: 8, 128>}]} {
    %c0 = arith.constant 0 : index
    %c0_0 = arith.constant 0 : index
    %0 = vector.load %arg2[%c0, %c0_0] : memref<8x128xf32, #tpu.memory_space<vmem>>, vector<8x128xf32>
    %cst = arith.constant 0.915163576 : f32
    %1 = vector.broadcast %cst : f32 to vector<8x128xf32>
    %2 = arith.mulf %1, %0 : vector<8x128xf32>
    %c0_1 = arith.constant 0 : index
    %c0_2 = arith.constant 0 : index
    %3 = vector.load %arg1[%c0_1, %c0_2] : memref<8x128xf32, #tpu.memory_space<vmem>>, vector<8x128xf32>
    %cst_3 = arith.constant 0.0806737616 : f32
    %4 = vector.broadcast %cst_3 : f32 to vector<8x128xf32>
    %5 = arith.mulf %4, %3 : vector<8x128xf32>
    %6 = arith.addf %2, %5 : vector<8x128xf32>
    %c0_4 = arith.constant 0 : index
    %c0_5 = arith.constant 0 : index
    %7 = vector.load %arg3[%c0_4, %c0_5] : memref<8x128xf32, #tpu.memory_space<vmem>>, vector<8x128xf32>
    tpu.vector_store %arg3[%c0_4, %c0_5], %6 {strides = array<i32>} : memref<8x128xf32, #tpu.memory_space<vmem>>, vector<8x128xf32>,
    return
  }
  func.func @transform_0(%arg0: i32) -> (i32, i32) {
    %c0_i32 = arith.constant 0 : i32
    %c0_i32_0 = arith.constant 0 : i32
    return %arg0, %c0_i32 : i32, i32
  }
  func.func @transform_1(%arg0: i32) -> (i32, i32) {
    %c0_i32 = arith.constant 0 : i32
    %c0_i32_0 = arith.constant 0 : i32
    return %arg0, %c0_i32 : i32, i32
  }
  func.func @transform_2(%arg0: i32) -> (i32, i32) {
    %c0_i32 = arith.constant 0 : i32
    %c0_i32_0 = arith.constant 0 : i32
    return %arg0, %c0_i32 : i32, i32
  }
}

</mosaic_0001>

<llo_original>
// kernel: step_fn.1
$region0: #{step_fn.1}
  #allocation0 [shape = 'u32[]', space=smem, size = 0x4, offset = 0x4, fixed_abs, tag = 'smem constant byte address 0x4 - core index']
  #allocation1 [shape = 'u32[144,128]{1,0:T(1,128)}', space=vmem, size = 0x12000, scoped, tag = 'internal scratch']
  %s0 = inlined_call_operand.vmem [shape: f32[8,128], index: 0, kind: input, shape index: {}]
  %s1 = inlined_call_operand.vmem [shape: f32[8,128], index: 1, kind: input, shape index: {}, may-alias: {1,2}]
  %s2 = inlined_call_operand.vmem [shape: f32[8,128], index: 2, kind: output, shape index: {}, may-alias: {1,2}]
  %s3 = sld [smem:[#allocation0]]
  $region18: #{step_fn.1} parent=0
    _
  %s5 = ssub.s32 1, %s3
  %s6 = scalar_select 0, %s5, %s3
  // Predicated region
  $region2: #{step_fn.1} parent=0 // pred_check
    _
  $region3: #{step_fn.1} parent=0 // pred_check_branch
    %8 = sbr.rel (0) target = $region5
  $region4: #{step_fn.1} parent=0 // pred_region
    _
  $region5: #{step_fn.1} parent=0 // pred_fallthru
    _
  // Predicated region
  $region6: #{step_fn.1} parent=0 // pred_check
    _
  $region7: #{step_fn.1} parent=0 // pred_check_branch
    %10 = sbr.rel (0) target = $region9
  $region8: #{step_fn.1} parent=0 // pred_region
    _
  $region9: #{step_fn.1} parent=0 // pred_fallthru
    _
  %v11 = vld [vmem:[%s1] sm:$0xff]
  %v12 = vmul.f32 %v11, 0.9151636
  %v13 = vld [vmem:[%s0] sm:$0xff]
  %v14 = vmul.f32 %v13, 0.08067376
  %v15 = vadd.f32 %v12, %v14
  %16 = vst [vmem:[%s2] sm:$0xff] %v15
  // Predicated region
  $region10: #{step_fn.1} parent=0 // pred_check
    _
  $region11: #{step_fn.1} parent=0 // pred_check_branch
    %18 = sbr.rel (0) target = $region13
  $region12: #{step_fn.1} parent=0 // pred_region
    _
  $region13: #{step_fn.1} parent=0 // pred_fallthru
    _
  // Predicated region
  $region14: #{step_fn.1} parent=0 // pred_check
    _
  $region15: #{step_fn.1} parent=0 // pred_check_branch
    %20 = sbr.rel (0) target = $region17
  $region16: #{step_fn.1} parent=0 // pred_region
    _
  $region17: #{step_fn.1} parent=0 // pred_fallthru
    _

</llo_original>
